<compile_context>
chip_gen: v6e
topology: v6e:2x2x1
jax: 0.10.0
libtpu: 0.0.40
codegen_flags: <defaults>
</compile_context>

<pallas_src>
import functools

import jax
import jax.numpy as jnp
from jax.experimental import pallas as pl
from jax.experimental.pallas import tpu as pltpu


_TARGET_BLOCK_BYTES = 2 << 20   # ~2 MiB blocks: ~85%+ of HBM roofline, 8 MiB buffered (v5e-safe)
_SMALL_BYTES = 2 << 20          # below this, run the whole op in a single invocation
_SUBLANE_ROUND = 32             # covers f32 (8), bf16 (16), int8/fp8 (32) sublane packing


def _intensity_tiled_kernel(num_tiles, noise_ref, x_ref, o_ref):
    # noise_ref: (B,) f32 in SMEM (scalar prefetch): 1 + scale*clip(r, -2, 2)
    # x_ref/o_ref: (1, tile_rows, lane) block of one batch's flattened features.
    b = pl.program_id(0) // num_tiles
    n = noise_ref[b]
    o_ref[...] = (x_ref[...] * n).astype(o_ref.dtype)


def _intensity_small_kernel(noise_ref, x_ref, o_ref):
    # Whole problem in one step: noise_ref (B,1,1) f32 broadcast against x_ref (B, rows, lane).
    o_ref[...] = (x_ref[...] * noise_ref[...]).astype(o_ref.dtype)


def intensity(x, r, scale):
    """Pallas equivalent of Intensity.forward.

    x: (B, C, H, W) array (any float dtype), NCHW like the PyTorch module.
    r: (B,) float32 standard-normal samples (the T.randn((B,1,1,1)) equivalent).
    scale: python float.
    """
    B, C, H, W = x.shape
    chw = C * H * W
    out_dtype = x.dtype
    itemsize = x.dtype.itemsize

    # Hoist the noise computation out of the kernel: (B,) f32 vector.
    noise = 1.0 + float(scale) * jnp.clip(r.astype(jnp.float32), -2.0, 2.0)

    # Pick a layout with zero extra HBM traffic (contiguous reshape only, no pad/slice):
    # prefer a lane-dense width that exactly divides C*H*W, else view as (C*H, W).
    lane = None
    for cand in (512, 256, 128):
        if chw % cand == 0:
            lane = cand
            break
    if lane is None:
        rows, lane = C * H, W           # full-extent last dim -> exempt from 128-lane rule
    else:
        rows = chw // lane

    x_view = x.reshape(B, rows, lane)   # contiguous reshape: no data movement
    total_bytes = B * rows * lane * itemsize

    if total_bytes <= _SMALL_BYTES:
        # Tiny input: single invocation, whole slab resident in VMEM, no grid overhead.
        out = pl.pallas_call(
            _intensity_small_kernel,
            out_shape=jax.ShapeDtypeStruct((B, rows, lane), out_dtype),
        )(noise.reshape(B, 1, 1), x_view)
        return out.reshape(B, C, H, W)

    # Row tiling: ~2 MiB blocks, rounded to 32 sublanes (dtype-safe). The final block may be
    # ragged; Pallas pads reads / masks writes for it automatically (elementwise -> harmless).
    row_bytes = lane * itemsize
    tile_rows = max(_SUBLANE_ROUND,
                    (_TARGET_BLOCK_BYTES // row_bytes) // _SUBLANE_ROUND * _SUBLANE_ROUND)
    if tile_rows >= rows:
        tile_rows = rows                # block == full dim -> exempt from 8-divisibility
        num_tiles = 1
    else:
        num_tiles = pl.cdiv(rows, tile_rows)

    # Flattened single parallel grid axis (length B*num_tiles) so both v7x TensorCores get
    # ~half the tiles even when B == 1; plain sequential loop on v5e/v6e.
    grid = (B * num_tiles,)
    idx_map = lambda i, noise_ref: (i // num_tiles, i % num_tiles, 0)

    out = pl.pallas_call(
        functools.partial(_intensity_tiled_kernel, num_tiles),
        out_shape=jax.ShapeDtypeStruct((B, rows, lane), out_dtype),
        grid_spec=pltpu.PrefetchScalarGridSpec(
            num_scalar_prefetch=1,      # noise vector -> SMEM before the grid runs
            grid=grid,
            in_specs=[pl.BlockSpec((1, tile_rows, lane), idx_map)],
            out_specs=pl.BlockSpec((1, tile_rows, lane), idx_map),
        ),
        compiler_params=pltpu.CompilerParams(
            dimension_semantics=("parallel",),
        ),
    )(noise, x_view)
    return out.reshape(B, C, H, W)


if __name__ == "__main__":
    # TODO(synk): torch.randn happens outside the kernel (r is drawn with jax.random and passed
    # in), matching the module's semantics of one N(0,1) sample per batch element.
    key = jax.random.PRNGKey(0)
    scale = 0.05  # Intensity(scale=0.05)

    cases = [
        ((2, 4, 16, 16), jnp.float32),    # spec shape: lane-dense small path (CHW = 1024)
        ((2, 3, 84, 84), jnp.float32),    # CHW not a multiple of 128 -> (C*H, W) view, no pad
        ((2, 3, 84, 84), jnp.bfloat16),   # sub-32-bit dtype path
        ((1, 64, 128, 100), jnp.float32), # lane-dense tiled path, ragged final row-block
        ((1, 100, 90, 84), jnp.float32),  # (C*H, W) tiled path, ragged final row-block
    ]
    for (B, C, H, W), dtype in cases:
        key, kx, kr = jax.random.split(key, 3)
        x = jax.random.normal(kx, (B, C, H, W), dtype=jnp.float32).astype(dtype)
        r = jax.random.normal(kr, (B,), dtype=jnp.float32)

        out = jax.block_until_ready(intensity(x, r, scale))

        # Pure-JAX reference (same math: f32 multiply, cast back to x.dtype).
        noise_ref = 1.0 + scale * jnp.clip(r, -2.0, 2.0)
        ref = (x.astype(jnp.float32) * noise_ref[:, None, None, None]).astype(dtype)
        assert out.shape == x.shape and out.dtype == x.dtype
        tol = 1e-6 if dtype == jnp.float32 else 1e-2
        assert jnp.allclose(out.astype(jnp.float32), ref.astype(jnp.float32),
                            atol=tol, rtol=tol), f"mismatch at {(B, C, H, W)} {dtype}"

    print("KERNEL_OK")
</pallas_src>

<mosaic_0001>
module attributes {stable_mosaic.version = 11 : i64} {
  func.func @_intensity_small_kernel(%arg0: memref<2x1x1xf32, #tpu.memory_space<vmem>>, %arg1: memref<2x2x512xf32, #tpu.memory_space<vmem>>, %arg2: memref<2x2x512xf32, #tpu.memory_space<vmem>>) attributes {dimension_semantics = [], scalar_prefetch = 0 : i64, scratch_operands = 0 : i64, tpu.core_type = #tpu.core_type<tc>} {
    %c0 = arith.constant 0 : index
    %c0_0 = arith.constant 0 : index
    %c0_1 = arith.constant 0 : index
    %0 = vector.load %arg1[%c0, %c0_0, %c0_1] : memref<2x2x512xf32, #tpu.memory_space<vmem>>, vector<2x2x512xf32>
    %c0_2 = arith.constant 0 : index
    %c0_3 = arith.constant 0 : index
    %c0_4 = arith.constant 0 : index
    %1 = vector.load %arg0[%c0_2, %c0_3, %c0_4] : memref<2x1x1xf32, #tpu.memory_space<vmem>>, vector<2x1x1xf32>
    %2 = vector.broadcast %1 : vector<2x1x1xf32> to vector<2x2x512xf32>
    %3 = arith.mulf %0, %2 : vector<2x2x512xf32>
    %c0_5 = arith.constant 0 : index
    %c0_6 = arith.constant 0 : index
    %c0_7 = arith.constant 0 : index
    %4 = vector.load %arg2[%c0_5, %c0_6, %c0_7] : memref<2x2x512xf32, #tpu.memory_space<vmem>>, vector<2x2x512xf32>
    tpu.vector_store %arg2[%c0_5, %c0_6, %c0_7], %3 {strides = array<i32>} : memref<2x2x512xf32, #tpu.memory_space<vmem>>, vector<2x2x512xf32>,
    return
  }
}

</mosaic_0001>

<llo_original>
// kernel: tpu_custom_call.1
$region0: #{tpu_custom_call.1}
  #allocation0 [shape = 'u32[]', space=smem, size = 0x4, offset = 0x4, fixed_abs, tag = 'smem constant byte address 0x4 - core index']
  #allocation1 [shape = 'u32[144,128]{1,0:T(1,128)}', space=vmem, size = 0x12000, scoped, tag = 'internal scratch']
  %s0 = inlined_call_operand.vmem [shape: f32[2,1,1], index: 0, kind: input, shape index: {}]
  %s1 = inlined_call_operand.hbm [shape: f32[2,2,512], index: 1, kind: input, shape index: {}]
  %s2 = inlined_call_operand.hbm [shape: f32[2,2,512], index: 2, kind: output, shape index: {}]
  %s3 = sld [smem:[#allocation0]]
  $region22: #{tpu_custom_call.1} parent=0
    _
  %s5 = ssub.s32 1, %s3
  %s6 = scalar_select 0, %s5, %s3
  $region1: #{tpu_custom_call.1} parent=0
    #allocation2 [shape = 'u8[8192]{0}', space=vmem, size = 0x2000, scoped, tag = 'input window, operand 1, single buffered']
    #allocation3 [shape = 's32[1]{0}', space=sflag, size = 0x4, scoped, tag = 'scoped memory for tpu_custom_call.1']
    #allocation4 [shape = 's32[1]{0}', space=sflag, size = 0x4, scoped, tag = 'scoped memory for tpu_custom_call.1']
    #allocation5 [shape = 'u8[8192]{0}', space=vmem, size = 0x2000, scoped, tag = 'output window, operand 0, single buffered']
    %7 = vsyncpa [#allocation3], 0
    %8 = vsyncpa [#allocation4], 0
    // Predicated region
    $region2: #{tpu_custom_call.1} parent=1 // pred_check
      _
    $region3: #{tpu_custom_call.1} parent=1 // pred_check_branch
      %10 = sbr.rel (0) target = $region5
    $region4: #{tpu_custom_call.1} parent=1 // pred_region
      _
    $region5: #{tpu_custom_call.1} parent=1 // pred_fallthru
      _
    // Predicated region
    $region6: #{tpu_custom_call.1} parent=1 // pred_check
      _
    $region7: #{tpu_custom_call.1} parent=1 // pred_check_branch
      %12 = sbr.rel (0) target = $region9
    $region8: #{tpu_custom_call.1} parent=1 // pred_region
      %s14 = ssub.s32 256, 256
      %15 = vsyncadd [#allocation3], %s14
      %s16 = sshll.u32 [#allocation2], 4
      %s17 = int_to_ptr.vmem [resolvable:$true] %s16
      %22 = dma.hbm_to_vmem [thread:$0]  %s1, 256, %s17, [#allocation3], 128, 128, 8
    $region9: #{tpu_custom_call.1} parent=1 // pred_fallthru
      _
    // Predicated region
    $region10: #{tpu_custom_call.1} parent=1 // pred_check
      _
    $region11: #{tpu_custom_call.1} parent=1 // pred_check_branch
      %24 = sbr.rel (0) target = $region13
    $region12: #{tpu_custom_call.1} parent=1 // pred_region
      %25 = dma.done [#allocation3], 256
    $region13: #{tpu_custom_call.1} parent=1 // pred_fallthru
      _
    %v26 = vld [vmem:[#allocation2] sm:$0xff]
    %v27 = vld [vmem:[#allocation2 + $0x8] sm:$0xff]
    %v28 = vld [vmem:[%s0] sm:$0x1]
    %v29 = vld [vmem:[%s0 + $0x1] sm:$0x1]
    %v32 = vlaneseq
    %v33 = vshrl.u32 %v32, 7
    %v34 = vsub.s32 0, %v33
    %v35 = vrot.slane %v28, %v34
    %v36 = vlaneseq
    %v37 = vshrl.u32 %v36, 7
    %v38 = vsub.s32 0, %v37
    %v39 = vrot.slane %v29, %v38
    %40 = vset.pattern.permute.xlu0 0
    %41 = vperm.xlu0 %40, %v35
    %v42 = vpop.permute.xlu0 %41
    %44 = vset.pattern.permute.xlu0 0
    %45 = vperm.xlu0 %44, %v39
    %v46 = vpop.permute.xlu0 %45
    %v48 = vmul.f32 %v26, %v42
    %v49 = vmul.f32 %v27, %v46
    %50 = vst [vmem:[#allocation5] sm:$0xff] %v48
    %51 = vst [vmem:[#allocation5 + $0x8] sm:$0xff] %v49
    // Predicated region
    $region14: #{tpu_custom_call.1} parent=1 // pred_check
      _
    $region15: #{tpu_custom_call.1} parent=1 // pred_check_branch
      %53 = sbr.rel (0) target = $region17
    $region16: #{tpu_custom_call.1} parent=1 // pred_region
      %s55 = ssub.s32 256, 256
      %56 = vsyncadd [#allocation4], %s55
      %s57 = sshll.u32 [#allocation5], 4
      %s58 = int_to_ptr.vmem [resolvable:$true] %s57
      %63 = dma.vmem_to_hbm [thread:$0]  %s58, 256, %s2, [#allocation4], 128, 128, 8
    $region17: #{tpu_custom_call.1} parent=1 // pred_fallthru
      _
    // Predicated region
    $region18: #{tpu_custom_call.1} parent=1 // pred_check
      _
    $region19: #{tpu_custom_call.1} parent=1 // pred_check_branch
      %65 = sbr.rel (0) target = $region21
    $region20: #{tpu_custom_call.1} parent=1 // pred_region
      %66 = dma.done [#allocation4], 256
    $region21: #{tpu_custom_call.1} parent=1 // pred_fallthru
      _
    %67 = vsyncpa [#allocation3], 1
    %68 = vsyncpa [#allocation4], 1

</llo_original>
